<compile_context>
chip_gen: v5e
topology: v5e:2x2
jax: 0.10.0
libtpu: 0.0.40
codegen_flags: <defaults>
</compile_context>

<pallas_src>
import functools

import jax
import jax.numpy as jnp
from jax import lax
from jax.experimental import pallas as pl
from jax.experimental.pallas import tpu as pltpu


def cross_attn_kernel(x1_ref, x2_ref, wq_ref, wkv_ref, wp_ref, bp_ref, o_ref,
                      *, scale, batch_block):
    wq = wq_ref[...]            # (C, C)   bf16  (out, in) -- used untransposed
    wkv = wkv_ref[...]          # (2C, C)  bf16  [Wk ; Wv]
    wp = wp_ref[...]            # (C, C)   bf16
    bp = bp_ref[...]            # (C, 1)   f32
    c = wq.shape[0]

    # Static unroll over the batch elements folded into this grid step.
    for b in range(batch_block):
        x1 = x1_ref[b]          # (C, N) bf16, channel-major (native layout)
        x2 = x2_ref[b]          # (C, N) bf16

        # Channel-major projections: q^T = Wq @ x1, [k^T; v^T] = Wkv @ x2.
        # bf16 operands, f32 accumulation on the MXU.
        q_t = jnp.dot(wq, x1, preferred_element_type=jnp.float32)      # (C, N)
        kv_t = jnp.dot(wkv, x2, preferred_element_type=jnp.float32)    # (2C, N)
        k_t = kv_t[:c, :]                                              # (C, N)
        v_t = kv_t[c:, :]                                              # (C, N)

        # Scores: fold the scale into q, transpose the small f32 tile once so
        # the matmul is in standard (N,C)@(C,N) form.
        q = (q_t * scale).T                                            # (N, C)
        s = jnp.dot(q, k_t, preferred_element_type=jnp.float32)        # (N, N)

        # Numerically stable softmax; stats stay f32, normalization via EUP.
        m = jnp.max(s, axis=-1, keepdims=True)
        p = jnp.exp(s - m)
        l = jnp.sum(p, axis=-1, keepdims=True)                         # (N, 1)
        p = p * pl.reciprocal(l, approx=True)                          # (N, N)

        # out^T[c, n] = sum_m v^T[c, m] * p[n, m]  (contract key axis of both
        # operands -> transpose-RHS matmul, bf16 operands, f32 accumulation).
        pv_t = lax.dot_general(
            v_t.astype(jnp.bfloat16), p.astype(jnp.bfloat16),
            dimension_numbers=(((1,), (1,)), ((), ())),
            preferred_element_type=jnp.float32)                        # (C, N)

        # Output projection stays channel-major; store is the native layout.
        out_t = jnp.dot(wp, pv_t.astype(jnp.bfloat16),
                        preferred_element_type=jnp.float32)            # (C, N)
        o_ref[b] = (out_t + bp).astype(o_ref.dtype)


def cross_attention(x1, x2, w_qkv, w_proj, b_proj, *, num_heads=4):
    """x1, x2: (B, C, H, W) float32. Returns (B, C, H, W), matching PyTorch."""
    B, C, H, W = x1.shape
    N = H * W
    scale = float((C // num_heads) ** (-0.5))

    # Native channel-major layout: (B, C, H, W) -> (B, C, N). Pure reshape,
    # no HBM transpose.  Cast to bf16 (MXU fast path, half the DMA bytes).
    x1c = x1.reshape(B, C, N).astype(jnp.bfloat16)
    x2c = x2.reshape(B, C, N).astype(jnp.bfloat16)

    # PyTorch Linear: y = x @ W.T.  In channel-major form q^T = Wq @ x, so the
    # (out, in) weights are used as-is.  K and V are fused into one (2C, C)
    # operand so x2's projection is a single matmul.
    wq = w_qkv[:C].astype(jnp.bfloat16)                  # (C, C)
    wkv = w_qkv[C:].astype(jnp.bfloat16)                 # (2C, C)  [Wk ; Wv]
    wp = w_proj.astype(jnp.bfloat16)                     # (C, C)
    bp = b_proj.reshape(C, 1).astype(jnp.float32)        # (C, 1)

    # Batch folding per grid step: amortize per-step overhead, but
    #   (a) keep >= 2 grid steps when B >= 2 (both v7x TensorCores get work),
    #   (b) bound the per-step NxN scores/probabilities footprint.
    # TODO(synk): for very large N (H*W in the thousands) switch to a
    # flash-style KV-tile loop instead of materializing (N, N) scores.
    scores_bytes = 2 * N * N * 4
    bb_cap = max(1, (24 * 1024 * 1024) // max(scores_bytes, 1))
    bb = max(1, min(B // 2 if B >= 2 else B, bb_cap, 8))
    while B % bb:
        bb -= 1
    grid = (B // bb,)

    # Explicit VMEM budget from the per-step footprint (double-buffered I/O
    # blocks + weights + f32 intermediates), with 4x headroom, capped at
    # 48 MiB (safe on v7x's 64 MiB VMEM; tiny problems stay at 16 MiB).
    per_step = (2 * 2 * bb * C * N * 2            # x1/x2 blocks, dbl-buffered, bf16
                + 2 * bb * C * N * 4              # output block, dbl-buffered, f32
                + 4 * C * C * 2 + C * 4           # weights (bf16) + bias (f32)
                + bb * (10 * C * N + 3 * N * N) * 4)   # in-kernel intermediates
    vmem_bytes = int(min(48 * 1024 * 1024, max(16 * 1024 * 1024, 4 * per_step)))

    cost = pl.CostEstimate(
        flops=2 * B * N * C * (4 * C + 2 * N),
        transcendentals=B * N * (N + 1),
        bytes_accessed=2 * B * C * N * 2 + B * C * N * 4 + 4 * C * C * 2 + C * 4)

    kernel = functools.partial(cross_attn_kernel, scale=scale, batch_block=bb)

    out = pl.pallas_call(
        kernel,
        out_shape=jax.ShapeDtypeStruct((B, C, N), jnp.float32),
        grid=grid,
        in_specs=[
            pl.BlockSpec((bb, C, N), lambda i: (i, 0, 0)),   # x1, channel-major
            pl.BlockSpec((bb, C, N), lambda i: (i, 0, 0)),   # x2, channel-major
            pl.BlockSpec((C, C), lambda i: (0, 0)),          # Wq
            pl.BlockSpec((2 * C, C), lambda i: (0, 0)),      # [Wk ; Wv]
            pl.BlockSpec((C, C), lambda i: (0, 0)),          # Wproj
            pl.BlockSpec((C, 1), lambda i: (0, 0)),          # bproj
        ],
        out_specs=pl.BlockSpec((bb, C, N), lambda i: (i, 0, 0)),
        compiler_params=pltpu.CompilerParams(
            dimension_semantics=("parallel",),
            vmem_limit_bytes=vmem_bytes),
        cost_estimate=cost,
    )(x1c, x2c, wq, wkv, wp, bp)

    # (B, C, N) -> (B, C, H, W): pure reshape, no transpose.
    return out.reshape(B, C, H, W)


def cross_attention_ref(x1, x2, w_qkv, w_proj, b_proj, *, num_heads=4):
    """Pure-JAX reference mirroring the PyTorch forward (f32)."""
    B, C, H, W = x1.shape
    scale = (C // num_heads) ** (-0.5)
    x1s = x1.reshape(B, C, H * W).transpose(0, 2, 1)
    x2s = x2.reshape(B, C, H * W).transpose(0, 2, 1)
    qkv1 = x1s @ w_qkv.T
    qkv2 = x2s @ w_qkv.T
    q = qkv1[..., :C]
    k = qkv2[..., C:2 * C]
    v = qkv2[..., 2 * C:]
    attn = jnp.einsum("bnc,bmc->bnm", q, k) * scale
    attn = jax.nn.softmax(attn, axis=-1)
    out = attn @ v
    out = out @ w_proj.T + b_proj
    return out.transpose(0, 2, 1).reshape(B, C, H, W)


if __name__ == "__main__":
    B, C, H, W = 2, 32, 8, 8
    num_heads = 4

    key = jax.random.PRNGKey(0)
    k1, k2, k3, k4, k5 = jax.random.split(key, 5)

    x1 = jax.random.normal(k1, (B, C, H, W), dtype=jnp.float32)
    x2 = jax.random.normal(k2, (B, C, H, W), dtype=jnp.float32)

    # Deterministic synthetic parameters (shapes per nn.Linear in __init__).
    w_qkv = jax.random.normal(k3, (3 * C, C), dtype=jnp.float32) * (1.0 / C ** 0.5)
    w_proj = jax.random.normal(k4, (C, C), dtype=jnp.float32) * (1.0 / C ** 0.5)
    b_proj = jax.random.normal(k5, (C,), dtype=jnp.float32) * 0.01

    out = cross_attention(x1, x2, w_qkv, w_proj, b_proj, num_heads=num_heads)
    out = jax.block_until_ready(out)

    # The kernel consumes bf16 operands (with f32 accumulation / f32 softmax
    # stats); validate against the f32 reference evaluated on the same
    # bf16-rounded operands so the comparison isolates kernel error.
    r = lambda a: a.astype(jnp.bfloat16).astype(jnp.float32)
    ref = cross_attention_ref(r(x1), r(x2), r(w_qkv), r(w_proj), b_proj,
                              num_heads=num_heads)

    assert out.shape == (B, C, H, W)
    assert jnp.allclose(out, ref, atol=2e-2, rtol=2e-2), \
        "mismatch vs pure-JAX reference"

    print("KERNEL_OK")
</pallas_src>

<mosaic_0001>
module attributes {stable_mosaic.version = 11 : i64} {
  func.func @cross_attn_kernel(%arg0: i32, %arg1: memref<1x32x64xbf16, #tpu.memory_space<vmem>>, %arg2: memref<1x32x64xbf16, #tpu.memory_space<vmem>>, %arg3: memref<32x32xbf16, #tpu.memory_space<vmem>>, %arg4: memref<64x32xbf16, #tpu.memory_space<vmem>>, %arg5: memref<32x32xbf16, #tpu.memory_space<vmem>>, %arg6: memref<32x1xf32, #tpu.memory_space<vmem>>, %arg7: memref<1x32x64xf32, #tpu.memory_space<vmem>>) attributes {dimension_semantics = [#tpu.dimension_semantics<parallel>], iteration_bounds = array<i64: 2>, scalar_prefetch = 0 : i64, scratch_operands = 0 : i64, tpu.core_type = #tpu.core_type<tc>, window_params = [{transform_indices = @transform_0, window_bounds = array<i64: 1, 32, 64>}, {transform_indices = @transform_1, window_bounds = array<i64: 1, 32, 64>}, {pipeline_mode = #tpu.pipeline_mode<synchronous>, transform_indices = @transform_2, window_bounds = array<i64: 32, 32>}, {pipeline_mode = #tpu.pipeline_mode<synchronous>, transform_indices = @transform_3, window_bounds = array<i64: 64, 32>}, {pipeline_mode = #tpu.pipeline_mode<synchronous>, transform_indices = @transform_4, window_bounds = array<i64: 32, 32>}, {pipeline_mode = #tpu.pipeline_mode<synchronous>, transform_indices = @transform_5, window_bounds = array<i64: 32, 1>}, {transform_indices = @transform_6, window_bounds = array<i64: 1, 32, 64>}]} {
    %c0 = arith.constant 0 : index
    %c0_0 = arith.constant 0 : index
    %0 = vector.load %arg3[%c0, %c0_0] : memref<32x32xbf16, #tpu.memory_space<vmem>>, vector<32x32xbf16>
    %c0_1 = arith.constant 0 : index
    %c0_2 = arith.constant 0 : index
    %1 = vector.load %arg4[%c0_1, %c0_2] : memref<64x32xbf16, #tpu.memory_space<vmem>>, vector<64x32xbf16>
    %c0_3 = arith.constant 0 : index
    %c0_4 = arith.constant 0 : index
    %2 = vector.load %arg5[%c0_3, %c0_4] : memref<32x32xbf16, #tpu.memory_space<vmem>>, vector<32x32xbf16>
    %c0_5 = arith.constant 0 : index
    %c0_6 = arith.constant 0 : index
    %3 = vector.load %arg6[%c0_5, %c0_6] : memref<32x1xf32, #tpu.memory_space<vmem>>, vector<32x1xf32>
    %c0_7 = arith.constant 0 : index
    %c0_8 = arith.constant 0 : index
    %c0_9 = arith.constant 0 : index
    %4 = vector.load %arg1[%c0_7, %c0_8, %c0_9] : memref<1x32x64xbf16, #tpu.memory_space<vmem>>, vector<1x32x64xbf16>
    %5 = vector.shape_cast %4 : vector<1x32x64xbf16> to vector<32x64xbf16>
    %c0_10 = arith.constant 0 : index
    %c0_11 = arith.constant 0 : index
    %c0_12 = arith.constant 0 : index
    %6 = vector.load %arg2[%c0_10, %c0_11, %c0_12] : memref<1x32x64xbf16, #tpu.memory_space<vmem>>, vector<1x32x64xbf16>
    %7 = vector.shape_cast %6 : vector<1x32x64xbf16> to vector<32x64xbf16>
    %cst = arith.constant dense<0.000000e+00> : vector<32x64xf32>
    %8 = tpu.matmul %0, %5, %cst {dimension_numbers = #tpu.dot_dimension_numbers<[1], [0], [0], [1], [0, 0, 1, 1], [], []>} : vector<32x32xbf16>, vector<32x64xbf16>, vector<32x64xf32> -> vector<32x64xf32>
    %cst_13 = arith.constant dense<0.000000e+00> : vector<64x64xf32>
    %9 = tpu.matmul %1, %7, %cst_13 {dimension_numbers = #tpu.dot_dimension_numbers<[1], [0], [0], [1], [0, 0, 1, 1], [], []>} : vector<64x32xbf16>, vector<32x64xbf16>, vector<64x64xf32> -> vector<64x64xf32>
    %10 = vector.extract_strided_slice %9 {offsets = [0, 0], sizes = [32, 64], strides = [1, 1]} : vector<64x64xf32> to vector<32x64xf32>
    %11 = vector.extract_strided_slice %9 {offsets = [32, 0], sizes = [32, 64], strides = [1, 1]} : vector<64x64xf32> to vector<32x64xf32>
    %cst_14 = arith.constant 0.353553385 : f32
    %12 = vector.broadcast %cst_14 : f32 to vector<32x64xf32>
    %13 = arith.mulf %8, %12 : vector<32x64xf32>
    %14 = tpu.transpose %13, [1, 0] : vector<32x64xf32> -> vector<64x32xf32>
    %cst_15 = arith.constant dense<0.000000e+00> : vector<64x64xf32>
    %15 = tpu.matmul %14, %10, %cst_15 {dimension_numbers = #tpu.dot_dimension_numbers<[1], [0], [0], [1], [0, 0, 1, 1], [], []>} : vector<64x32xf32>, vector<32x64xf32>, vector<64x64xf32> -> vector<64x64xf32>
    %cst_16 = arith.constant dense<0xFF800000> : vector<64xf32>
    %16 = vector.multi_reduction <maximumf>, %15, %cst_16 [1] : vector<64x64xf32> to vector<64xf32>
    %17 = vector.shape_cast %16 : vector<64xf32> to vector<64x1xf32>
    %18 = vector.broadcast %17 : vector<64x1xf32> to vector<64x64xf32>
    %19 = arith.subf %15, %18 : vector<64x64xf32>
    %20 = math.exp %19 : vector<64x64xf32>
    %cst_17 = arith.constant dense<0.000000e+00> : vector<64xf32>
    %21 = vector.multi_reduction <add>, %20, %cst_17 [1] : vector<64x64xf32> to vector<64xf32>
    %22 = vector.shape_cast %21 : vector<64xf32> to vector<64x1xf32>
    %23 = tpu.reciprocal %22 {approx = true} : vector<64x1xf32> -> vector<64x1xf32>
    %24 = vector.broadcast %23 : vector<64x1xf32> to vector<64x64xf32>
    %25 = arith.mulf %20, %24 : vector<64x64xf32>
    %26 = arith.truncf %11 : vector<32x64xf32> to vector<32x64xbf16>
    %27 = arith.truncf %25 : vector<64x64xf32> to vector<64x64xbf16>
    %cst_18 = arith.constant dense<0.000000e+00> : vector<32x64xf32>
    %28 = tpu.matmul %26, %27, %cst_18 {dimension_numbers = #tpu.dot_dimension_numbers<[1], [1], [0], [0], [0, 0, 1, 0], [], []>} : vector<32x64xbf16>, vector<64x64xbf16>, vector<32x64xf32> -> vector<32x64xf32>
    %29 = arith.truncf %28 : vector<32x64xf32> to vector<32x64xbf16>
    %cst_19 = arith.constant dense<0.000000e+00> : vector<32x64xf32>
    %30 = tpu.matmul %2, %29, %cst_19 {dimension_numbers = #tpu.dot_dimension_numbers<[1], [0], [0], [1], [0, 0, 1, 1], [], []>} : vector<32x32xbf16>, vector<32x64xbf16>, vector<32x64xf32> -> vector<32x64xf32>
    %31 = vector.broadcast %3 : vector<32x1xf32> to vector<32x64xf32>
    %32 = arith.addf %30, %31 : vector<32x64xf32>
    %c0_20 = arith.constant 0 : index
    %c0_21 = arith.constant 0 : index
    %c0_22 = arith.constant 0 : index
    %33 = vector.load %arg7[%c0_20, %c0_21, %c0_22] : memref<1x32x64xf32, #tpu.memory_space<vmem>>, vector<1x32x64xf32>
    %34 = vector.shape_cast %33 : vector<1x32x64xf32> to vector<32x64xf32>
    %35 = vector.shape_cast %32 : vector<32x64xf32> to vector<1x32x64xf32>
    tpu.vector_store %arg7[%c0_20, %c0_21, %c0_22], %35 {strides = array<i32>} : memref<1x32x64xf32, #tpu.memory_space<vmem>>, vector<1x32x64xf32>,
    return
  }
  func.func @transform_0(%arg0: i32) -> (i32, i32, i32) {
    %c0_i32 = arith.constant 0 : i32
    %c0_i32_0 = arith.constant 0 : i32
    %c0_i32_1 = arith.constant 0 : i32
    return %arg0, %c0_i32, %c0_i32_0 : i32, i32, i32
  }
  func.func @transform_1(%arg0: i32) -> (i32, i32, i32) {
    %c0_i32 = arith.constant 0 : i32
    %c0_i32_0 = arith.constant 0 : i32
    %c0_i32_1 = arith.constant 0 : i32
    return %arg0, %c0_i32, %c0_i32_0 : i32, i32, i32
  }
  func.func @transform_2(%arg0: i32) -> (i32, i32) {
    %c0_i32 = arith.constant 0 : i32
    %c0_i32_0 = arith.constant 0 : i32
    %c0_i32_1 = arith.constant 0 : i32
    return %c0_i32, %c0_i32_0 : i32, i32
  }
  func.func @transform_3(%arg0: i32) -> (i32, i32) {
    %c0_i32 = arith.constant 0 : i32
    %c0_i32_0 = arith.constant 0 : i32
    %c0_i32_1 = arith.constant 0 : i32
    return %c0_i32, %c0_i32_0 : i32, i32
  }
  func.func @transform_4(%arg0: i32) -> (i32, i32) {
    %c0_i32 = arith.constant 0 : i32
    %c0_i32_0 = arith.constant 0 : i32
    %c0_i32_1 = arith.constant 0 : i32
    return %c0_i32, %c0_i32_0 : i32, i32
  }
  func.func @transform_5(%arg0: i32) -> (i32, i32) {
    %c0_i32 = arith.constant 0 : i32
    %c0_i32_0 = arith.constant 0 : i32
    %c0_i32_1 = arith.constant 0 : i32
    return %c0_i32, %c0_i32_0 : i32, i32
  }
  func.func @transform_6(%arg0: i32) -> (i32, i32, i32) {
    %c0_i32 = arith.constant 0 : i32
    %c0_i32_0 = arith.constant 0 : i32
    %c0_i32_1 = arith.constant 0 : i32
    return %arg0, %c0_i32, %c0_i32_0 : i32, i32, i32
  }
}

</mosaic_0001>

<llo_original>
// kernel: tpu_custom_call.1
$region0: #{tpu_custom_call.1}
  #allocation0 [shape = 'u32[]', space=smem, size = 0x4, offset = 0x4, fixed_abs, tag = 'smem constant byte address 0x4 - core index']
  #allocation1 [shape = 'u32[72,128]{1,0:T(1,128)}', space=vmem, size = 0x9000, scoped, tag = 'internal scratch']
  %s0 = inlined_call_operand.vmem [shape: bf16[2,32,64], index: 0, kind: input, shape index: {}]
  %s1 = inlined_call_operand.vmem [shape: bf16[2,32,64], index: 1, kind: input, shape index: {}]
  %s2 = inlined_call_operand.vmem [shape: bf16[32,32], index: 2, kind: input, shape index: {}]
  %s3 = inlined_call_operand.vmem [shape: bf16[64,32], index: 3, kind: input, shape index: {}]
  %s4 = inlined_call_operand.hbm [shape: bf16[32,32], index: 4, kind: input, shape index: {}]
  %s5 = inlined_call_operand.vmem [shape: f32[32,1], index: 5, kind: input, shape index: {}]
  %s6 = inlined_call_operand.hbm [shape: f32[2,32,64], index: 6, kind: output, shape index: {}]
  %s7 = sld [smem:[#allocation0]]
  $region61: #{tpu_custom_call.1} parent=0
    _
  %s9 = ssub.s32 1, %s7
  %s10 = scalar_select 0, %s9, %s7
  $region1: #{tpu_custom_call.1} parent=0
    #allocation2 [shape = 'u8[8192]{0}', space=vmem, size = 0x2000, scoped, tag = 'input window, operand 4, single buffered']
    #allocation3 [shape = 's32[2]{0}', space=sflag, size = 0x8, scoped, tag = 'scoped memory for tpu_custom_call.1']
    #allocation4 [shape = 's32[2]{0}', space=sflag, size = 0x8, scoped, tag = 'scoped memory for tpu_custom_call.1']
    #allocation5 [shape = 'u8[32768]{0}', space=vmem, size = 0x8000, scoped, tag = 'output window, operand 0']
    %11 = vsyncpa [#allocation3], 0
    %12 = vsyncpa [#allocation4], 0
    %s13 = scalar_lea.sflag [#allocation4], 1
    %14 = vsyncpa %s13, 0
    loop: start=0, step=1, limit=4
    $region2: #{tpu_custom_call.1} parent=1 // loop_pre_header
      _
    $region3: #{tpu_custom_call.1} parent=1 // loop_header
      %s16 = sphi 0, %s20
      %p17 = scmp.ge.s32.totalorder %s16, 4
      %s26 = sphi 0, %s28
      %s29 = sphi 0, %s26
      %s30 = sphi 0, %s29
      %s46 = sphi 0, %s30
      %s52 = sphi 0, %s54
      %s55 = sphi 0, %s52
      %s56 = sphi 0, %s55
      %s72 = sphi 0, %s56
      %s76 = sphi 0, %s76
      %s78 = sphi 0, %s76
      %s79 = sphi 0, %s78
      %s93 = sphi 0, %s79
      %s97 = sphi 0, %s97
      %s99 = sphi 0, %s97
      %s100 = sphi 0, %s99
      %s114 = sphi 0, %s100
      %s118 = sphi 0, %s118
      %s120 = sphi 0, %s118
      %s121 = sphi 0, %s120
      %s135 = sphi 0, %s121
      %s139 = sphi 0, %s139
      %s141 = sphi 0, %s139
      %s142 = sphi 0, %s141
      %s156 = sphi 0, %s142
      %s162 = sphi 0, %s164
      %s165 = sphi 0, %s162
      %s166 = sphi 0, %s165
      %s182 = sphi 0, %s166
    $region4: #{tpu_custom_call.1} parent=1 // loop_header_branch
      %19 = sbr.rel (%p17) target = $region8
    $region5: #{tpu_custom_call.1} parent=1 // loop_body
      %s21 = ssub.s32 %s16, 1
      %s22 = ssub.s32 %s16, 2
      %s23 = sadd.s32 %s16, 1
      %s24 = ssub.s32 %s16, %s23
      %p25 = scmp.eq.s32.totalorder %s24, 0
      %s27 = sadd.s32 %s26, 1
      %s28 = scalar_select %p25, %s26, %s27
      %p31 = pneg %p25
      %p32 = scmp.eq.s32.totalorder %s16, 1
      %p33 = por %p31, %p32
      %p34 = scmp.ne.s32.totalorder %s26, %s29
      %p35 = scmp.eq.s32.totalorder %s16, 0
      %p36 = por %p34, %p35
      %p37 = scmp.ne.s32.totalorder %s26, %s29
      %p38 = scmp.eq.s32.totalorder %s21, 1
      %p39 = por %p37, %p38
      %p40 = scmp.ne.s32.totalorder %s29, %s30
      %p41 = scmp.eq.s32.totalorder %s21, 0
      %p42 = por %p40, %p41
      %p43 = scmp.ne.s32.totalorder %s29, %s30
      %p44 = scmp.eq.s32.totalorder %s22, 1
      %p45 = por %p43, %p44
      %p47 = scmp.ne.s32.totalorder %s30, %s46
      %p48 = scmp.eq.s32.totalorder %s22, 0
      %p49 = por %p47, %p48
      %s50 = ssub.s32 %s16, %s23
      %p51 = scmp.eq.s32.totalorder %s50, 0
      %s53 = sadd.s32 %s52, 1
      %s54 = scalar_select %p51, %s52, %s53
      %p57 = pneg %p51
      %p58 = scmp.eq.s32.totalorder %s16, 1
      %p59 = por %p57, %p58
      %p60 = scmp.ne.s32.totalorder %s52, %s55
      %p61 = scmp.eq.s32.totalorder %s16, 0
      %p62 = por %p60, %p61
      %p63 = scmp.ne.s32.totalorder %s52, %s55
      %p64 = scmp.eq.s32.totalorder %s21, 1
      %p65 = por %p63, %p64
      %p66 = scmp.ne.s32.totalorder %s55, %s56
      %p67 = scmp.eq.s32.totalorder %s21, 0
      %p68 = por %p66, %p67
      %p69 = scmp.ne.s32.totalorder %s55, %s56
      %p70 = scmp.eq.s32.totalorder %s22, 1
      %p71 = por %p69, %p70
      %p73 = scmp.ne.s32.totalorder %s56, %s72
      %p74 = scmp.eq.s32.totalorder %s22, 0
      %p75 = por %p73, %p74
      %s77 = sadd.s32 %s76, 1
      %p80 = scmp.eq.s32.totalorder %s16, 1
      %p81 = scmp.ne.s32.totalorder %s76, %s78
      %p82 = scmp.eq.s32.totalorder %s16, 0
      %p83 = por %p81, %p82
      %p84 = scmp.ne.s32.totalorder %s76, %s78
      %p85 = scmp.eq.s32.totalorder %s21, 1
      %p86 = por %p84, %p85
      %p87 = scmp.ne.s32.totalorder %s78, %s79
      %p88 = scmp.eq.s32.totalorder %s21, 0
      %p89 = por %p87, %p88
      %p90 = scmp.ne.s32.totalorder %s78, %s79
      %p91 = scmp.eq.s32.totalorder %s22, 1
      %p92 = por %p90, %p91
      %p94 = scmp.ne.s32.totalorder %s79, %s93
      %p95 = scmp.eq.s32.totalorder %s22, 0
      %p96 = por %p94, %p95
      %s98 = sadd.s32 %s97, 1
      %p101 = scmp.eq.s32.totalorder %s16, 1
      %p102 = scmp.ne.s32.totalorder %s97, %s99
      %p103 = scmp.eq.s32.totalorder %s16, 0
      %p104 = por %p102, %p103
      %p105 = scmp.ne.s32.totalorder %s97, %s99
      %p106 = scmp.eq.s32.totalorder %s21, 1
      %p107 = por %p105, %p106
      %p108 = scmp.ne.s32.totalorder %s99, %s100
      %p109 = scmp.eq.s32.totalorder %s21, 0
      %p110 = por %p108, %p109
      %p111 = scmp.ne.s32.totalorder %s99, %s100
      %p112 = scmp.eq.s32.totalorder %s22, 1
      %p113 = por %p111, %p112
      %p115 = scmp.ne.s32.totalorder %s100, %s114
      %p116 = scmp.eq.s32.totalorder %s22, 0
      %p117 = por %p115, %p116
      %s119 = sadd.s32 %s118, 1
      %p122 = scmp.eq.s32.totalorder %s16, 1
      %p123 = scmp.ne.s32.totalorder %s118, %s120
      %p124 = scmp.eq.s32.totalorder %s16, 0
      %p125 = por %p123, %p124
      %p126 = scmp.ne.s32.totalorder %s118, %s120
      %p127 = scmp.eq.s32.totalorder %s21, 1
      %p128 = por %p126, %p127
      %p129 = scmp.ne.s32.totalorder %s120, %s121
      %p130 = scmp.eq.s32.totalorder %s21, 0
      %p131 = por %p129, %p130
      %p132 = scmp.ne.s32.totalorder %s120, %s121
      %p133 = scmp.eq.s32.totalorder %s22, 1
      %p134 = por %p132, %p133
      %p136 = scmp.ne.s32.totalorder %s121, %s135
      %p137 = scmp.eq.s32.totalorder %s22, 0
      %p138 = por %p136, %p137
      %s140 = sadd.s32 %s139, 1
      %p143 = scmp.eq.s32.totalorder %s16, 1
      %p144 = scmp.ne.s32.totalorder %s139, %s141
      %p145 = scmp.eq.s32.totalorder %s16, 0
      %p146 = por %p144, %p145
      %p147 = scmp.ne.s32.totalorder %s139, %s141
      %p148 = scmp.eq.s32.totalorder %s21, 1
      %p149 = por %p147, %p148
      %p150 = scmp.ne.s32.totalorder %s141, %s142
      %p151 = scmp.eq.s32.totalorder %s21, 0
      %p152 = por %p150, %p151
      %p153 = scmp.ne.s32.totalorder %s141, %s142
      %p154 = scmp.eq.s32.totalorder %s22, 1
      %p155 = por %p153, %p154
      %p157 = scmp.ne.s32.totalorder %s142, %s156
      %p158 = scmp.eq.s32.totalorder %s22, 0
      %p159 = por %p157, %p158
      %s160 = ssub.s32 %s16, %s23
      %p161 = scmp.eq.s32.totalorder %s160, 0
      %s163 = sadd.s32 %s162, 1
      %s164 = scalar_select %p161, %s162, %s163
      %p167 = pneg %p161
      %p168 = scmp.eq.s32.totalorder %s16, 1
      %p169 = por %p167, %p168
      %p170 = scmp.ne.s32.totalorder %s162, %s165
      %p171 = scmp.eq.s32.totalorder %s16, 0
      %p172 = por %p170, %p171
      %p173 = scmp.ne.s32.totalorder %s162, %s165
      %p174 = scmp.eq.s32.totalorder %s21, 1
      %p175 = por %p173, %p174
      %p176 = scmp.ne.s32.totalorder %s165, %s166
      %p177 = scmp.eq.s32.totalorder %s21, 0
      %p178 = por %p176, %p177
      %p179 = scmp.ne.s32.totalorder %s165, %s166
      %p180 = scmp.eq.s32.totalorder %s22, 1
      %p181 = por %p179, %p180
      %p183 = scmp.ne.s32.totalorder %s166, %s182
      %p184 = scmp.eq.s32.totalorder %s22, 0
      %p185 = por %p183, %p184
      %p186 = scmp.le.s32.totalorder 1, %s16
      %p187 = scmp.lt.s32.totalorder %s16, 3
      %p188 = pnand %p186, %p187
      %p189 = pneg %p188
      // Predicated region
      $region9: #{tpu_custom_call.1} parent=5 // pred_check
        _
      $region10: #{tpu_custom_call.1} parent=5 // pred_check_branch
        %191 = sbr.rel (%p188) target = $region12
      $region11: #{tpu_custom_call.1} parent=5 // pred_region
        %s192 = ssub.s32 %s16, 1
        // Predicated region
        $region13: #{tpu_custom_call.1} parent=11 // pred_check
          %p193 = pneg %p89
        $region14: #{tpu_custom_call.1} parent=11 // pred_check_branch
          %195 = sbr.rel (%p193) target = $region16
        $region15: #{tpu_custom_call.1} parent=11 // pred_region
          _
        $region16: #{tpu_custom_call.1} parent=11 // pred_fallthru
          _
        // Predicated region
        $region17: #{tpu_custom_call.1} parent=11 // pred_check
          %p196 = pneg %p110
        $region18: #{tpu_custom_call.1} parent=11 // pred_check_branch
          %198 = sbr.rel (%p196) target = $region20
        $region19: #{tpu_custom_call.1} parent=11 // pred_region
          _
        $region20: #{tpu_custom_call.1} parent=11 // pred_fallthru
          _
        // Predicated region
        $region21: #{tpu_custom_call.1} parent=11 // pred_check
          %p199 = pneg %p131
        $region22: #{tpu_custom_call.1} parent=11 // pred_check_branch
          %201 = sbr.rel (%p199) target = $region24
        $region23: #{tpu_custom_call.1} parent=11 // pred_region
          %203 = vsyncadd [#allocation3], 0
          %s204 = sshll.u32 %s4, 4
          %s205 = int_to_ptr.hbm [resolvable:$true] %s204
          %s206 = sshll.u32 [#allocation2], 4
          %s207 = int_to_ptr.vmem [resolvable:$true] %s206
          %212 = dma.hbm_to_vmem [thread:$0]  %s205, 256, %s207, [#allocation3], 64, 64, 4
        $region24: #{tpu_custom_call.1} parent=11 // pred_fallthru
          _
        // Predicated region
        $region25: #{tpu_custom_call.1} parent=11 // pred_check
          %p213 = pneg %p152
        $region26: #{tpu_custom_call.1} parent=11 // pred_check_branch
          %215 = sbr.rel (%p213) target = $region28
        $region27: #{tpu_custom_call.1} parent=11 // pred_region
          _
        $region28: #{tpu_custom_call.1} parent=11 // pred_fallthru
          _
      $region12: #{tpu_custom_call.1} parent=5 // pred_fallthru
        _
      %p216 = scmp.lt.s32.totalorder %s16, 2
      // Predicated region
      $region29: #{tpu_custom_call.1} parent=5 // pred_check
        %p217 = pneg %p216
      $region30: #{tpu_custom_call.1} parent=5 // pred_check_branch
        %219 = sbr.rel (%p217) target = $region32
      $region31: #{tpu_custom_call.1} parent=5 // pred_region
        // Predicated region
        $region33: #{tpu_custom_call.1} parent=31 // pred_check
          %p220 = pneg %p36
        $region34: #{tpu_custom_call.1} parent=31 // pred_check_branch
          %222 = sbr.rel (%p220) target = $region36
        $region35: #{tpu_custom_call.1} parent=31 // pred_region
          %p223 = scmp.lt.s32.totalorder %s16, 1
          %s224 = scalar_select %p223, %s16, 1
          %s225 = smul.addr %s224, 4
          %s226 = smul.addr %s225, 4
          %s227 = scalar_lea.vmem %s0, %s226
        $region36: #{tpu_custom_call.1} parent=31 // pred_fallthru
          _
        // Predicated region
        $region37: #{tpu_custom_call.1} parent=31 // pred_check
          %p228 = pneg %p62
        $region38: #{tpu_custom_call.1} parent=31 // pred_check_branch
          %230 = sbr.rel (%p228) target = $region40
        $region39: #{tpu_custom_call.1} parent=31 // pred_region
          %p231 = scmp.lt.s32.totalorder %s16, 1
          %s232 = scalar_select %p231, %s16, 1
          %s233 = smul.addr %s232, 4
          %s234 = smul.addr %s233, 4
          %s235 = scalar_lea.vmem %s1, %s234
        $region40: #{tpu_custom_call.1} parent=31 // pred_fallthru
          _
      $region32: #{tpu_custom_call.1} parent=5 // pred_fallthru
        _
      %p236 = scmp.le.s32.totalorder 1, %s16
      %p237 = scmp.lt.s32.totalorder %s16, 3
      %p238 = pnand %p236, %p237
      %p239 = pneg %p238
      // Predicated region
      $region41: #{tpu_custom_call.1} parent=5 // pred_check
        _
      $region42: #{tpu_custom_call.1} parent=5 // pred_check_branch
        %241 = sbr.rel (%p238) target = $region44
      $region43: #{tpu_custom_call.1} parent=5 // pred_region
        %s242 = ssub.s32 %s16, 1
        // Predicated region
        $region45: #{tpu_custom_call.1} parent=43 // pred_check
          %p243 = pneg %p131
        $region46: #{tpu_custom_call.1} parent=43 // pred_check_branch
          %245 = sbr.rel (%p243) target = $region48
        $region47: #{tpu_custom_call.1} parent=43 // pred_region
          %247 = dma.done [#allocation3], 256
        $region48: #{tpu_custom_call.1} parent=43 // pred_fallthru
          _
        %p248 = scmp.lt.s32.totalorder %s21, 1
        %s249 = scalar_select %p248, %s21, 1
        %s250 = smul.addr %s249, 4
        %s251 = smul.addr %s250, 4
        %s252 = scalar_lea.vmem %s0, %s251
        %p253 = pneg %p42
        %p254 = pneg %p39
        %p255 = scmp.lt.s32.totalorder %s21, 1
        %s256 = scalar_select %p255, %s21, 1
        %s257 = smul.addr %s256, 4
        %s258 = smul.addr %s257, 4
        %s259 = scalar_lea.vmem %s1, %s258
        %p260 = pneg %p68
        %p261 = pneg %p65
        %p262 = pneg %p89
        %p263 = pneg %p86
        %p264 = pneg %p110
        %p265 = pneg %p107
        %p266 = pneg %p131
        %p267 = pneg %p128
        %p268 = pneg %p152
        %p269 = pneg %p149
        %p270 = pneg %p178
        %p271 = pneg %p175
        %s272 = sand.u32 %s165, 1
        %s273 = scalar_lea.sflag [#allocation4], %s272
        %s274 = sand.u32 %s165, 1
        %s275 = smul.addr %s274, 32
        %s276 = scalar_lea.vmem [#allocation5], %s275
        %p277 = scmp.lt.s32.totalorder %s21, 1
        %s278 = scalar_select %p277, %s21, 1
        %s279 = smul.addr %s278, 4
        %s280 = smul.addr %s279, 4
        %s281 = scalar_lea.vmem %s0, %s280
        %p282 = scmp.lt.s32.totalorder %s21, 1
        %s283 = scalar_select %p282, %s21, 1
        %s284 = smul.addr %s283, 4
        %s285 = smul.addr %s284, 4
        %s286 = scalar_lea.vmem %s1, %s285
        %v288 = vld [vmem:[%s2] sm:$0xf]
        %v289 = vld [vmem:[%s2 + $0x4] sm:$0xf]
        %v290 = vld [vmem:[%s2 + $0x8] sm:$0xf]
        %v291 = vld [vmem:[%s2 + $0xc] sm:$0xf]
        %v292 = vld [vmem:[%s3] sm:$0xf]
        %v293 = vld [vmem:[%s3 + $0x4] sm:$0xf]
        %v294 = vld [vmem:[%s3 + $0x8] sm:$0xf]
        %v295 = vld [vmem:[%s3 + $0xc] sm:$0xf]
        %v296 = vld [vmem:[%s3 + $0x10] sm:$0xf]
        %v297 = vld [vmem:[%s3 + $0x14] sm:$0xf]
        %v298 = vld [vmem:[%s3 + $0x18] sm:$0xf]
        %v299 = vld [vmem:[%s3 + $0x1c] sm:$0xf]
        %v300 = vld [vmem:[#allocation2] sm:$0xf]
        %v301 = vld [vmem:[#allocation2 + $0x4] sm:$0xf]
        %v302 = vld [vmem:[#allocation2 + $0x8] sm:$0xf]
        %v303 = vld [vmem:[#allocation2 + $0xc] sm:$0xf]
        %v304 = vld [vmem:[%s5] sm:$0xff]
        %v305 = vld [vmem:[%s5 + $0x8] sm:$0xff]
        %v306 = vld [vmem:[%s5 + $0x10] sm:$0xff]
        %v307 = vld [vmem:[%s5 + $0x18] sm:$0xff]
        %v308 = vld [vmem:[%s281] sm:$0xf]
        %v309 = vld [vmem:[%s281 + $0x4] sm:$0xf]
        %v310 = vld [vmem:[%s281 + $0x8] sm:$0xf]
        %v311 = vld [vmem:[%s281 + $0xc] sm:$0xf]
        %v312 = vld [vmem:[%s286] sm:$0xf]
        %v313 = vld [vmem:[%s286 + $0x4] sm:$0xf]
        %v314 = vld [vmem:[%s286 + $0x8] sm:$0xf]
        %v315 = vld [vmem:[%s286 + $0xc] sm:$0xf]
        %v320 = vunpack.c.l.b16 %v288
        %v321 = vunpack.c.l.b16 %v289
        %v322 = vunpack.c.l.b16 %v290
        %v323 = vunpack.c.l.b16 %v291
        %v324 = vpack.c.b16 %v321, %v320
        %v325 = vpack.c.b16 %v323, %v322
        %v330 = vunpack.c.l.b16 %v308
        %v331 = vunpack.c.l.b16 %v309
        %v332 = vunpack.c.l.b16 %v310
        %v333 = vunpack.c.l.b16 %v311
        %v334 = vpack.c.b16 %v331, %v330
        %v335 = vpack.c.b16 %v333, %v332
        %vm338 = vcmask 261120
        %v340 = vsel %vm338, %v324, 0
        %v343 = vsel %vm338, %v325, 0
        %345 = vmatpush.bf16.msra.mxu0 0
        %346 = vmatpush.bf16.msra.mxu0 0
        %347 = vmatpush.bf16.msra.mxu0 0
        %348 = vmatpush.bf16.msra.mxu0 0
        %349 = vmatpush.bf16.msra.mxu0 0
        %350 = vmatpush.bf16.msra.mxu0 0
        %351 = vmatpush.bf16.msra.mxu0 %v335
        %352 = vmatpush.bf16.msra.mxu0 %v334
        %353 = vmatmul.bf16.gmra.mxu0 %v340
        %v354 = vpop.f32.mrf.mxu0
        %v355 = vadd.f32 0.0, %v354
        %v356 = vpop.f32.mrf.mxu0
        %v357 = vadd.f32 0.0, %v356
        %358 = vmatmul.bf16.gmra.mxu0 %v343
        %v359 = vpop.f32.mrf.mxu0
        %v360 = vadd.f32 0.0, %v359
        %v361 = vpop.f32.mrf.mxu0
        %v362 = vadd.f32 0.0, %v361
        %363 = vdwg.mxu0
        %v372 = vunpack.c.l.b16 %v292
        %v373 = vunpack.c.l.b16 %v293
        %v374 = vunpack.c.l.b16 %v294
        %v375 = vunpack.c.l.b16 %v295
        %v376 = vunpack.c.l.b16 %v296
        %v377 = vunpack.c.l.b16 %v297
        %v378 = vunpack.c.l.b16 %v298
        %v379 = vunpack.c.l.b16 %v299
        %v380 = vpack.c.b16 %v373, %v372
        %v381 = vpack.c.b16 %v375, %v374
        %v382 = vpack.c.b16 %v377, %v376
        %v383 = vpack.c.b16 %v379, %v378
        %v388 = vunpack.c.l.b16 %v312
        %v389 = vunpack.c.l.b16 %v313
        %v390 = vunpack.c.l.b16 %v314
        %v391 = vunpack.c.l.b16 %v315
        %v392 = vpack.c.b16 %v389, %v388
        %v393 = vpack.c.b16 %v391, %v390
        %v397 = vsel %vm338, %v380, 0
        %v400 = vsel %vm338, %v381, 0
        %v403 = vsel %vm338, %v382, 0
        %v406 = vsel %vm338, %v383, 0
        %408 = vmatpush.bf16.msra.mxu0 0
        %409 = vmatpush.bf16.msra.mxu0 0
        %410 = vmatpush.bf16.msra.mxu0 0
        %411 = vmatpush.bf16.msra.mxu0 0
        %412 = vmatpush.bf16.msra.mxu0 0
        %413 = vmatpush.bf16.msra.mxu0 0
        %414 = vmatpush.bf16.msra.mxu0 %v393
        %415 = vmatpush.bf16.msra.mxu0 %v392
        %416 = vmatmul.bf16.gmra.mxu0 %v397
        %v417 = vpop.f32.mrf.mxu0
        %v418 = vadd.f32 0.0, %v417
        %v419 = vpop.f32.mrf.mxu0
        %v420 = vadd.f32 0.0, %v419
        %421 = vmatmul.bf16.gmra.mxu0 %v400
        %v422 = vpop.f32.mrf.mxu0
        %v423 = vadd.f32 0.0, %v422
        %v424 = vpop.f32.mrf.mxu0
        %v425 = vadd.f32 0.0, %v424
        %426 = vmatmul.bf16.gmra.mxu0 %v403
        %v427 = vpop.f32.mrf.mxu0
        %v428 = vadd.f32 0.0, %v427
        %v429 = vpop.f32.mrf.mxu0
        %v430 = vadd.f32 0.0, %v429
        %431 = vmatmul.bf16.gmra.mxu0 %v406
        %v432 = vpop.f32.mrf.mxu0
        %v433 = vadd.f32 0.0, %v432
        %v434 = vpop.f32.mrf.mxu0
        %v435 = vadd.f32 0.0, %v434
        %436 = vdwg.mxu0
        %v437 = vmul.f32 %v355, 0.35355338
        %v438 = vmul.f32 %v357, 0.35355338
        %v439 = vmul.f32 %v360, 0.35355338
        %v440 = vmul.f32 %v362, 0.35355338
        %441 = vxpose.xlu0.b32.start [1/16] %v437, 128
        %442 = vxpose.xlu0.b32.cont [2/16] %v438, 128
        %443 = vxpose.xlu0.b32.cont [3/16] %v439, 128
        %444 = vxpose.xlu0.b32.cont [4/16] %v440, 128
        %445 = vxpose.xlu0.b32.cont [5/16] 0.0, 128
        %446 = vxpose.xlu0.b32.cont [6/16] 0.0, 128
        %447 = vxpose.xlu0.b32.cont [7/16] 0.0, 128
        %448 = vxpose.xlu0.b32.cont [8/16] 0.0, 128
        %449 = vxpose.xlu0.b32.cont [9/16] 0.0, 128
        %450 = vxpose.xlu0.b32.cont [10/16] 0.0, 128
        %451 = vxpose.xlu0.b32.cont [11/16] 0.0, 128
        %452 = vxpose.xlu0.b32.cont [12/16] 0.0, 128
        %453 = vxpose.xlu0.b32.cont [13/16] 0.0, 128
        %454 = vxpose.xlu0.b32.cont [14/16] 0.0, 128
        %455 = vxpose.xlu0.b32.cont [15/16] 0.0, 128
        %456 = vxpose.xlu0.b32.end [16/16] 0.0, 128
        %v457 = vpop.trf.xlu0
        %v458 = vpop.trf.xlu0
        %v459 = vpop.trf.xlu0
        %v460 = vpop.trf.xlu0
        %v461 = vpop.trf.xlu0
        %v462 = vpop.trf.xlu0
        %v463 = vpop.trf.xlu0
        %v464 = vpop.trf.xlu0
        %v465 = vpop.trf.xlu0
        %v466 = vpop.trf.xlu0
        %v467 = vpop.trf.xlu0
        %v468 = vpop.trf.xlu0
        %v469 = vpop.trf.xlu0
        %v470 = vpop.trf.xlu0
        %v471 = vpop.trf.xlu0
        %v472 = vpop.trf.xlu0
        %v474 = vsel %vm338, %v457, 0
        %v477 = vsel %vm338, %v458, 0
        %v480 = vsel %vm338, %v459, 0
        %v483 = vsel %vm338, %v460, 0
        %v486 = vsel %vm338, %v461, 0
        %v489 = vsel %vm338, %v462, 0
        %v492 = vsel %vm338, %v463, 0
        %v495 = vsel %vm338, %v464, 0
        %497 = vmatpush.msra.mxu0 0.0
        %498 = vmatpush.msra.mxu0 0.0
        %499 = vmatpush.msra.mxu0 0.0
        %500 = vmatpush.msra.mxu0 0.0
        %501 = vmatpush.msra.mxu0 0.0
        %502 = vmatpush.msra.mxu0 0.0
        %503 = vmatpush.msra.mxu0 0.0
        %504 = vmatpush.msra.mxu0 0.0
        %505 = vmatpush.msra.mxu0 0.0
        %506 = vmatpush.msra.mxu0 0.0
        %507 = vmatpush.msra.mxu0 0.0
        %508 = vmatpush.msra.mxu0 0.0
        %509 = vmatpush.msra.mxu0 %v425
        %510 = vmatpush.msra.mxu0 %v423
        %511 = vmatpush.msra.mxu0 %v420
        %512 = vmatpush.msra.mxu0 %v418
        %513 = vmatmul.f32.gmra.mxu0 %v474
        %v514 = vpop.f32.mrf.mxu0
        %v515 = vadd.f32 0.0, %v514
        %516 = vmatmul.f32.gmra.mxu0 %v477
        %v517 = vpop.f32.mrf.mxu0
        %v518 = vadd.f32 0.0, %v517
        %519 = vmatmul.f32.gmra.mxu0 %v480
        %v520 = vpop.f32.mrf.mxu0
        %v521 = vadd.f32 0.0, %v520
        %522 = vmatmul.f32.gmra.mxu0 %v483
        %v523 = vpop.f32.mrf.mxu0
        %v524 = vadd.f32 0.0, %v523
        %525 = vmatmul.f32.gmra.mxu0 %v486
        %v526 = vpop.f32.mrf.mxu0
        %v527 = vadd.f32 0.0, %v526
        %528 = vmatmul.f32.gmra.mxu0 %v489
        %v529 = vpop.f32.mrf.mxu0
        %v530 = vadd.f32 0.0, %v529
        %531 = vmatmul.f32.gmra.mxu0 %v492
        %v532 = vpop.f32.mrf.mxu0
        %v533 = vadd.f32 0.0, %v532
        %534 = vmatmul.f32.gmra.mxu0 %v495
        %v535 = vpop.f32.mrf.mxu0
        %v536 = vadd.f32 0.0, %v535
        %537 = vdwg.mxu0
        %vm538 = vcmask 523264
        %v539 = vsel %vm538, %v515, -inf
        %540 = vmax.xlane.f32.xlu0 %v539
        %v541 = vpop.xlane.xlu0 %540
        %v542 = vsel %vm538, %v518, -inf
        %543 = vmax.xlane.f32.xlu0 %v542
        %v544 = vpop.xlane.xlu0 %543
        %v545 = vsel %vm538, %v521, -inf
        %546 = vmax.xlane.f32.xlu0 %v545
        %v547 = vpop.xlane.xlu0 %546
        %v548 = vsel %vm538, %v524, -inf
        %549 = vmax.xlane.f32.xlu0 %v548
        %v550 = vpop.xlane.xlu0 %549
        %v551 = vsel %vm538, %v527, -inf
        %552 = vmax.xlane.f32.xlu0 %v551
        %v553 = vpop.xlane.xlu0 %552
        %v554 = vsel %vm538, %v530, -inf
        %555 = vmax.xlane.f32.xlu0 %v554
        %v556 = vpop.xlane.xlu0 %555
        %v557 = vsel %vm538, %v533, -inf
        %558 = vmax.xlane.f32.xlu0 %v557
        %v559 = vpop.xlane.xlu0 %558
        %v560 = vsel %vm538, %v536, -inf
        %561 = vmax.xlane.f32.xlu0 %v560
        %v562 = vpop.xlane.xlu0 %561
        %v563 = vsub.f32 %v515, %v541
        %v564 = vsub.f32 %v518, %v544
        %v565 = vsub.f32 %v521, %v547
        %v566 = vsub.f32 %v524, %v550
        %v567 = vsub.f32 %v527, %v553
        %v568 = vsub.f32 %v530, %v556
        %v569 = vsub.f32 %v533, %v559
        %v570 = vsub.f32 %v536, %v562
        %v571 = vmul.f32 %v563, 1.442695
        %v572 = vpow.pop %v571
        %v573 = vmul.f32 %v564, 1.442695
        %v574 = vpow.pop %v573
        %v575 = vmul.f32 %v565, 1.442695
        %v576 = vpow.pop %v575
        %v577 = vmul.f32 %v566, 1.442695
        %v578 = vpow.pop %v577
        %v579 = vmul.f32 %v567, 1.442695
        %v580 = vpow.pop %v579
        %v581 = vmul.f32 %v568, 1.442695
        %v582 = vpow.pop %v581
        %v583 = vmul.f32 %v569, 1.442695
        %v584 = vpow.pop %v583
        %v585 = vmul.f32 %v570, 1.442695
        %v586 = vpow.pop %v585
        %v587 = vsel %vm538, %v572, 0.0
        %588 = vadd.xlane.f32.xlu0 %v587
        %v589 = vpop.xlane.xlu0 %588
        %v590 = vsel %vm538, %v574, 0.0
        %591 = vadd.xlane.f32.xlu0 %v590
        %v592 = vpop.xlane.xlu0 %591
        %v593 = vsel %vm538, %v576, 0.0
        %594 = vadd.xlane.f32.xlu0 %v593
        %v595 = vpop.xlane.xlu0 %594
        %v596 = vsel %vm538, %v578, 0.0
        %597 = vadd.xlane.f32.xlu0 %v596
        %v598 = vpop.xlane.xlu0 %597
        %v599 = vsel %vm538, %v580, 0.0
        %600 = vadd.xlane.f32.xlu0 %v599
        %v601 = vpop.xlane.xlu0 %600
        %v602 = vsel %vm538, %v582, 0.0
        %603 = vadd.xlane.f32.xlu0 %v602
        %v604 = vpop.xlane.xlu0 %603
        %v605 = vsel %vm538, %v584, 0.0
        %606 = vadd.xlane.f32.xlu0 %v605
        %v607 = vpop.xlane.xlu0 %606
        %v608 = vsel %vm538, %v586, 0.0
        %609 = vadd.xlane.f32.xlu0 %v608
        %v610 = vpop.xlane.xlu0 %609
        %v611 = vrcp.pop %v589
        %v612 = vrcp.pop %v592
        %v613 = vrcp.pop %v595
        %v614 = vrcp.pop %v598
        %v615 = vrcp.pop %v601
        %v616 = vrcp.pop %v604
        %v617 = vrcp.pop %v607
        %v618 = vrcp.pop %v610
        %v619 = vmul.f32 %v572, %v611
        %v620 = vmul.f32 %v574, %v612
        %v621 = vmul.f32 %v576, %v613
        %v622 = vmul.f32 %v578, %v614
        %v623 = vmul.f32 %v580, %v615
        %v624 = vmul.f32 %v582, %v616
        %v625 = vmul.f32 %v584, %v617
        %v626 = vmul.f32 %v586, %v618
        %v627 = vpack.c.bf16 %v430, %v428
        %v628 = vpack.c.bf16 %v435, %v433
        %v629 = vpack.c.bf16 %v620, %v619
        %v630 = vpack.c.bf16 %v622, %v621
        %v631 = vpack.c.bf16 %v624, %v623
        %v632 = vpack.c.bf16 %v626, %v625
        %v634 = vsel %vm538, %v627, 0
        %v637 = vsel %vm538, %v628, 0
        %v640 = vsel %vm538, %v629, 0
        %v643 = vsel %vm538, %v630, 0
        %v646 = vsel %vm538, %v631, 0
        %v649 = vsel %vm538, %v632, 0
        %651 = vmatpush.bf16.xpose.msra.mxu0 0
        %652 = vmatpush.bf16.xpose.msra.mxu0 0
        %653 = vmatpush.bf16.xpose.msra.mxu0 0
        %654 = vmatpush.bf16.xpose.msra.mxu0 0
        %655 = vmatpush.bf16.xpose.msra.mxu0 %v649
        %656 = vmatpush.bf16.xpose.msra.mxu0 %v646
        %657 = vmatpush.bf16.xpose.msra.mxu0 %v643
        %658 = vmatpush.bf16.xpose.msra.mxu0 %v640
        %659 = vmatmul.bf16.gmra.mxu0 %v634
        %v660 = vpop.f32.mrf.mxu0
        %v661 = vadd.f32 0.0, %v660
        %v662 = vpop.f32.mrf.mxu0
        %v663 = vadd.f32 0.0, %v662
        %664 = vmatmul.bf16.gmra.mxu0 %v637
        %v665 = vpop.f32.mrf.mxu0
        %v666 = vadd.f32 0.0, %v665
        %v667 = vpop.f32.mrf.mxu0
        %v668 = vadd.f32 0.0, %v667
        %669 = vdwg.mxu0
        %v670 = vpack.c.bf16 %v663, %v661
        %v671 = vpack.c.bf16 %v668, %v666
        %673 = vset.pattern.permute.xlu0 0
        %674 = vperm.xlu0 %673, %v304
        %v675 = vpop.permute.xlu0 %674
        %678 = vset.pattern.permute.xlu0 0
        %679 = vperm.xlu0 %678, %v305
        %v680 = vpop.permute.xlu0 %679
        %683 = vset.pattern.permute.xlu0 0
        %684 = vperm.xlu0 %683, %v306
        %v685 = vpop.permute.xlu0 %684
        %688 = vset.pattern.permute.xlu0 0
        %689 = vperm.xlu0 %688, %v307
        %v690 = vpop.permute.xlu0 %689
        %v696 = vunpack.c.l.b16 %v300
        %v697 = vunpack.c.l.b16 %v301
        %v698 = vunpack.c.l.b16 %v302
        %v699 = vunpack.c.l.b16 %v303
        %v700 = vpack.c.b16 %v697, %v696
        %v701 = vpack.c.b16 %v699, %v698
        %v703 = vsel %vm338, %v700, 0
        %v706 = vsel %vm338, %v701, 0
        %708 = vmatpush.bf16.msra.mxu0 0
        %709 = vmatpush.bf16.msra.mxu0 0
        %710 = vmatpush.bf16.msra.mxu0 0
        %711 = vmatpush.bf16.msra.mxu0 0
        %712 = vmatpush.bf16.msra.mxu0 0
        %713 = vmatpush.bf16.msra.mxu0 0
        %714 = vmatpush.bf16.msra.mxu0 %v671
        %715 = vmatpush.bf16.msra.mxu0 %v670
        %716 = vmatmul.bf16.gmra.mxu0 %v703
        %v717 = vpop.f32.mrf.mxu0
        %v718 = vadd.f32 %v675, %v717
        %v719 = vpop.f32.mrf.mxu0
        %v720 = vadd.f32 %v680, %v719
        %721 = vmatmul.bf16.gmra.mxu0 %v706
        %v722 = vpop.f32.mrf.mxu0
        %v723 = vadd.f32 %v685, %v722
        %v724 = vpop.f32.mrf.mxu0
        %v725 = vadd.f32 %v690, %v724
        %726 = vdwg.mxu0
        %727 = vst.msk [vmem:[%s276] sm:$0xff] %vm538, %v718
        %728 = vst.msk [vmem:[%s276 + $0x8] sm:$0xff] %vm538, %v720
        %729 = vst.msk [vmem:[%s276 + $0x10] sm:$0xff] %vm538, %v723
        %730 = vst.msk [vmem:[%s276 + $0x18] sm:$0xff] %vm538, %v725
        %s731 = sand.u32 %s165, 1
        %s732 = scalar_lea.sflag [#allocation4], %s731
        %s733 = sand.u32 %s165, 1
        %s734 = smul.addr %s733, 32
        %s735 = scalar_lea.vmem [#allocation5], %s734
        // Predicated region
        $region49: #{tpu_custom_call.1} parent=43 // pred_check
          %p736 = pneg %p175
        $region50: #{tpu_custom_call.1} parent=43 // pred_check_branch
          %738 = sbr.rel (%p736) target = $region52
        $region51: #{tpu_custom_call.1} parent=43 // pred_region
          %740 = vsyncadd %s732, 0
          %s741 = smul.addr %s21, 4
          %s742 = smul.addr %s741, 8
          %s743 = scalar_lea.hbm %s6, %s742
          %s744 = sshll.u32 %s735, 4
          %s745 = int_to_ptr.vmem [resolvable:$true] %s744
          %s746 = sshll.u32 %s743, 4
          %s747 = int_to_ptr.hbm [resolvable:$true] %s746
          %752 = dma.vmem_to_hbm [thread:$0]  %s745, 512, %s747, %s732, 128, 128, 8
        $region52: #{tpu_custom_call.1} parent=43 // pred_fallthru
          _
      $region44: #{tpu_custom_call.1} parent=5 // pred_fallthru
        _
      %p753 = scmp.le.s32.totalorder 2, %s16
      // Predicated region
      $region53: #{tpu_custom_call.1} parent=5 // pred_check
        %p754 = pneg %p753
      $region54: #{tpu_custom_call.1} parent=5 // pred_check_branch
        %756 = sbr.rel (%p754) target = $region56
      $region55: #{tpu_custom_call.1} parent=5 // pred_region
        %s757 = ssub.s32 %s16, 2
        // Predicated region
        $region57: #{tpu_custom_call.1} parent=55 // pred_check
          %p758 = pneg %p181
        $region58: #{tpu_custom_call.1} parent=55 // pred_check_branch
          %760 = sbr.rel (%p758) target = $region60
        $region59: #{tpu_custom_call.1} parent=55 // pred_region
          %s761 = sand.u32 %s166, 1
          %s762 = scalar_lea.sflag [#allocation4], %s761
          %s763 = sand.u32 %s166, 1
          %s764 = smul.addr %s763, 32
          %s765 = scalar_lea.vmem [#allocation5], %s764
          %767 = dma.done %s762, 512
        $region60: #{tpu_custom_call.1} parent=55 // pred_fallthru
          _
      $region56: #{tpu_custom_call.1} parent=5 // pred_fallthru
        _
    $region6: #{tpu_custom_call.1} parent=1 // loop_footer
      %s20 = sadd.s32 1, %s16
    $region7: #{tpu_custom_call.1} parent=1 // loop_footer_branch
      %15 = sbr.rel target = $region3
    $region8: #{tpu_custom_call.1} parent=1 // loop_exit
      _
    %768 = vsyncpa [#allocation3], 1
    %s769 = scalar_lea.sflag [#allocation3], 1
    %770 = vsyncpa %s769, 1
    %771 = vsyncpa [#allocation4], 1
    %s772 = scalar_lea.sflag [#allocation4], 1
    %773 = vsyncpa %s772, 1

</llo_original>
